<compile_context>
chip_gen: v6e
topology: v6e:2x2x1
jax: 0.10.0
libtpu: 0.0.40
codegen_flags: <defaults>
</compile_context>

<pallas_src>
import functools
import math

import numpy as np
import jax
import jax.numpy as jnp
from jax.experimental import pallas as pl
from jax.experimental.pallas import tpu as pltpu

_MIB = 1024 * 1024
_VMEM_BUDGET = 28 * _MIB      # total resident target (fits v7x's 64 MiB physical VMEM with headroom)
_STEP_PAYLOAD = 8 * _MIB      # per-grid-step in+out bytes target (amortizes ~0.35us step overhead)
_R_FOLD_LIMIT = 4 * _MIB      # keep the folded/grouped R fully resident only up to this size
_R_BLOCK_LIMIT = 1 * _MIB     # per-block R size in the column-tiled fallback
_VMEM_LIMIT_CAP = 48 * _MIB


# ---------------------------------------------------------------------------
# Kernels
# ---------------------------------------------------------------------------
def _gather_matmul_kernel(x_ref, r_ref, o_ref):
    """Fast path.  x_ref: (TM, K), r_ref: (K, MO), o_ref: (TM, MO).

    R already encodes nearest-neighbour column gather, row replication and
    (optional) row grouping as a 0/1 matrix, so one matmul emits the output
    tile with every element at its final, lane-dense offset.
    """
    xv = x_ref[...]
    rv = r_ref[...]
    if xv.dtype != rv.dtype:
        xv = xv.astype(rv.dtype)       # ints / fp16 are routed through the f32 MXU path
    o_ref[...] = jnp.dot(xv, rv, preferred_element_type=jnp.float32).astype(o_ref.dtype)


def _gather_matmul_coltiled_kernel(x_ref, r_ref, o_ref):
    """Column-tiled fast path (folded R too large to keep resident).

    x_ref: (TM, W), r_ref: (W, TN), o_ref: (TM, S_H, TN).  Row replication is
    done with a sublane broadcast into the 3-D output block, so only a (W, TN)
    slice of the un-folded R is resident per step.
    """
    xv = x_ref[...]
    rv = r_ref[...]
    if xv.dtype != rv.dtype:
        xv = xv.astype(rv.dtype)
    y = jnp.dot(xv, rv, preferred_element_type=jnp.float32).astype(o_ref.dtype)
    s_h = o_ref.shape[1]
    o_ref[...] = jnp.broadcast_to(y[:, None, :], (y.shape[0], s_h, y.shape[1]))


def _upsample_general_kernel(l_ref, x_ref, r_ref, o_ref, *, rows_first):
    """General nearest path (non-uniform row indices, e.g. fractional scale).

    l_ref: (H_out, H) 0/1 row gather, x_ref: (B, H, W), r_ref: (W, W_out),
    o_ref: (B, H_out, W_out).  Per plane:  Y = L @ X @ R  (exact selection).
    """
    lv = l_ref[...]
    rv = r_ref[...]
    nb = x_ref.shape[0]
    # TODO(synk): flatten the column contraction to one (B*H, W) @ R matmul when H
    # is sublane-aligned to raise MXU utilisation in this (rare) path.
    for b in range(nb):                      # static, small B
        xb = x_ref[b]
        if xb.dtype != rv.dtype:
            xb = xb.astype(rv.dtype)
        if rows_first:
            t = jnp.dot(lv, xb, preferred_element_type=jnp.float32).astype(rv.dtype)
            y = jnp.dot(t, rv, preferred_element_type=jnp.float32)
        else:
            t = jnp.dot(xb, rv, preferred_element_type=jnp.float32).astype(rv.dtype)
            y = jnp.dot(lv, t, preferred_element_type=jnp.float32)
        o_ref[b] = y.astype(o_ref.dtype)


# ---------------------------------------------------------------------------
# Host-side helpers
# ---------------------------------------------------------------------------
def _nearest_indices(in_size: int, scale: float):
    """PyTorch 'nearest' (scale_factor given): src = min(floor(dst/scale), in-1)."""
    # TODO(synk): this matches PyTorch's default 'nearest' path, not 'nearest-exact'
    # or recompute_scale_factor=True.
    out_size = int(np.floor(in_size * float(scale)))
    dst = np.arange(out_size, dtype=np.float64)
    src = np.floor(dst * (1.0 / float(scale))).astype(np.int64)
    return np.minimum(src, in_size - 1), out_size


def _round_down(v, m):
    return (v // m) * m


def _choose_tm(n_rows, pack, max_rows):
    """Row-tile size: multiple of `pack`, <= max_rows, >=2 grid steps when the
    problem allows (v7x has two TensorCores), preferring divisors of n_rows so
    the last tile is not a ragged, masked one."""
    if n_rows <= pack:
        return n_rows
    cap = max(pack, min(_round_down(max_rows, pack), _round_down(n_rows - 1, pack)))
    t = cap
    while t >= max(pack, cap // 2):
        if n_rows % t == 0:
            return t
        t -= pack
    return cap


def _choose_group(n_rows, w, m, mat_itemsize):
    """Group G consecutive flattened rows so the output tile's last dim (G*m) is a
    multiple of 128 (unmasked, lane-dense stores).  G must divide n_rows and keep
    the grouped block-diagonal R small."""
    if m % 128 == 0:
        return 1
    g0 = 128 // math.gcd(m, 128)
    cand = g0
    while cand <= min(n_rows, 512):
        if n_rows % cand == 0:
            if (cand * w) * (cand * m) * mat_itemsize <= _R_FOLD_LIMIT:
                return cand
            return 1
        cand += g0
    return 1


def _vmem_limit(footprint_bytes):
    return int(min(_VMEM_LIMIT_CAP,
                   max(16 * _MIB, footprint_bytes + footprint_bytes // 4 + 2 * _MIB)))


# ---------------------------------------------------------------------------
# Wrapper
# ---------------------------------------------------------------------------
def upsample_nearest(x: jax.Array, scale_factor) -> jax.Array:
    """Equivalent of F.interpolate(x, scale_factor=scale_factor) (mode='nearest', NCHW)."""
    N, C, H, W = x.shape
    if isinstance(scale_factor, (tuple, list)):
        s_hf, s_wf = float(scale_factor[0]), float(scale_factor[1])
    else:
        s_hf = s_wf = float(scale_factor)

    row_idx, H_out = _nearest_indices(H, s_hf)
    col_idx, W_out = _nearest_indices(W, s_wf)

    # Identity scale -> nothing to do.
    if np.array_equal(row_idx, np.arange(H)) and np.array_equal(col_idx, np.arange(W)):
        return x

    NC = N * C
    NR = NC * H
    itemsize = int(np.dtype(x.dtype).itemsize)
    pack = max(8, 32 // itemsize)            # sublane packing: f32 -> 8, bf16 -> 16, int8 -> 32

    # One-hot matmul dtype: bf16/f32 run natively on the MXU; everything else
    # (ints, fp16) goes through f32.  0/1 selection keeps float results bit-exact.
    # TODO(synk): integer inputs with |x| >= 2^24 lose exactness through the f32 MXU path.
    if x.dtype in (jnp.bfloat16, jnp.float32):
        mat_dtype = x.dtype
    else:
        mat_dtype = jnp.float32
    mat_itemsize = int(np.dtype(mat_dtype).itemsize)

    # Column gather one-hot: (X @ R)[:, j] = X[:, col_idx[j]].
    R_np = np.zeros((W, W_out), np.float32)
    R_np[col_idx, np.arange(W_out)] = 1.0

    uniform_rows = (H_out % H == 0) and np.array_equal(
        row_idx, np.repeat(np.arange(H), max(H_out // H, 1)))

    if uniform_rows:
        s_h = H_out // H
        m = s_h * W_out                      # output elements produced per input row
        r_fold_bytes = W * m * mat_itemsize
        use_coltiled = (r_fold_bytes > _R_FOLD_LIMIT) and (W_out >= 128)

        if not use_coltiled:
            # ---- fast path A: fold gather + replication (+ row grouping) into R ----
            G = _choose_group(NR, W, m, mat_itemsize)
            base = np.tile(R_np, (1, s_h))                           # (W, m): gather + replicate
            R_big = np.kron(np.eye(G, dtype=np.float32), base) if G > 1 else base
            R = jnp.asarray(R_big, dtype=mat_dtype)

            NRg = NR // G
            K, Mo = G * W, G * m
            row_bytes = (K + Mo) * itemsize
            r_bytes = K * Mo * mat_itemsize
            avail = max(_VMEM_BUDGET - 2 * r_bytes, 4 * row_bytes * pack)
            tm_budget = max(pack, min(_STEP_PAYLOAD // row_bytes, avail // (2 * row_bytes)))
            tm = _choose_tm(NRg, pack, tm_budget)
            grid = (pl.cdiv(NRg, tm),)
            footprint = 2 * tm * row_bytes + 2 * r_bytes

            cost = pl.CostEstimate(
                flops=2 * NRg * K * Mo,
                transcendentals=0,
                bytes_accessed=NR * W * itemsize + r_bytes + NR * m * itemsize)

            out2 = pl.pallas_call(
                _gather_matmul_kernel,
                out_shape=jax.ShapeDtypeStruct((NRg, Mo), x.dtype),
                grid=grid,
                in_specs=[
                    pl.BlockSpec((tm, K), lambda i: (i, 0)),     # grouped row tile of x
                    pl.BlockSpec((K, Mo), lambda i: (0, 0)),     # folded R (resident)
                ],
                out_specs=pl.BlockSpec((tm, Mo), lambda i: (i, 0)),
                compiler_params=pltpu.CompilerParams(
                    dimension_semantics=("parallel",),
                    vmem_limit_bytes=_vmem_limit(footprint)),
                cost_estimate=cost,
            )(x.reshape(NRg, K), R)
            # (NRg, Mo) is byte-identical to the NCHW output -> free reshape.
            return out2.reshape(N, C, H_out, W_out)

        # ---- fast path B: column-tiled (folded R would not fit in VMEM, e.g. v7x) ----
        # TODO(synk): on very wide f32 images v5e can turn MXU-bound here; exploiting
        # R's block structure (K tiles matched to column tiles) would restore the HBM roofline.
        R = jnp.asarray(R_np, dtype=mat_dtype)                       # (W, W_out), un-folded
        tn_cap = max(128, min(W_out,
                              _round_down(_R_BLOCK_LIMIT // max(W * mat_itemsize, 1), 128)))
        tn = tn_cap
        t = tn_cap
        while t >= max(128, tn_cap // 2):
            if W_out % t == 0:
                tn = t
                break
            t -= 128

        row_bytes = (W + s_h * tn) * itemsize
        r_blk_bytes = W * tn * mat_itemsize
        avail = max(_VMEM_BUDGET - 2 * r_blk_bytes, 4 * row_bytes * pack)
        tm_budget = max(pack, min(_STEP_PAYLOAD // row_bytes, avail // (2 * row_bytes)))
        tm = _choose_tm(NR, pack, tm_budget)
        grid = (pl.cdiv(NR, tm), pl.cdiv(W_out, tn))
        footprint = 2 * tm * row_bytes + 2 * r_blk_bytes

        cost = pl.CostEstimate(
            flops=2 * NR * W * W_out,
            transcendentals=0,
            bytes_accessed=NR * W * itemsize + W * W_out * mat_itemsize
            + NR * s_h * W_out * itemsize)

        out3 = pl.pallas_call(
            _gather_matmul_coltiled_kernel,
            out_shape=jax.ShapeDtypeStruct((NR, s_h, W_out), x.dtype),
            grid=grid,
            in_specs=[
                pl.BlockSpec((tm, W), lambda i, j: (i, 0)),          # row tile (reused over j)
                pl.BlockSpec((W, tn), lambda i, j: (0, j)),          # column slice of R
            ],
            out_specs=pl.BlockSpec((tm, s_h, tn), lambda i, j: (i, 0, j)),
            compiler_params=pltpu.CompilerParams(
                dimension_semantics=("parallel", "parallel"),
                vmem_limit_bytes=_vmem_limit(footprint)),
            cost_estimate=cost,
        )(x.reshape(NR, W), R)
        # (NR, s_h, W_out) is byte-identical to the NCHW output -> free reshape.
        return out3.reshape(N, C, H_out, W_out)

    # ---------------- general path: batched one-hot L @ X @ R ----------------
    L_np = np.zeros((H_out, H), np.float32)
    L_np[np.arange(H_out), row_idx] = 1.0
    L = jnp.asarray(L_np, dtype=mat_dtype)
    R = jnp.asarray(R_np, dtype=mat_dtype)

    fixed_bytes = 2 * (H_out * H + W * W_out) * mat_itemsize          # L and R (double-buffered)
    plane_bytes = (H * W + H_out * W_out) * itemsize                  # one in + out plane pair
    avail = max(_VMEM_BUDGET - fixed_bytes, 2 * plane_bytes)
    B = int(max(1, min(NC, 8, avail // (2 * plane_bytes))))
    if NC >= 2 and B >= NC:
        B = (NC + 1) // 2                    # >=2 grid steps so both v7x cores get work
    grid = (pl.cdiv(NC, B),)
    footprint = fixed_bytes + 2 * B * plane_bytes
    # TODO(synk): planes too large for VMEM at B=1 should tile H_out/W_out instead of
    # processing whole planes.

    macs_rows_first = H_out * H * W + H_out * W * W_out     # (L@X)@R
    macs_cols_first = H * W * W_out + H_out * H * W_out     # L@(X@R)
    rows_first = macs_rows_first <= macs_cols_first

    cost = pl.CostEstimate(
        flops=2 * NC * min(macs_rows_first, macs_cols_first),
        transcendentals=0,
        bytes_accessed=NC * H * W * itemsize
        + (H_out * H + W * W_out) * mat_itemsize
        + NC * H_out * W_out * itemsize)

    out = pl.pallas_call(
        functools.partial(_upsample_general_kernel, rows_first=rows_first),
        out_shape=jax.ShapeDtypeStruct((NC, H_out, W_out), x.dtype),
        grid=grid,
        in_specs=[
            pl.BlockSpec((H_out, H), lambda i: (0, 0)),           # L (resident)
            pl.BlockSpec((B, H, W), lambda i: (i, 0, 0)),         # B planes of x
            pl.BlockSpec((W, W_out), lambda i: (0, 0)),           # R (resident)
        ],
        out_specs=pl.BlockSpec((B, H_out, W_out), lambda i: (i, 0, 0)),
        compiler_params=pltpu.CompilerParams(
            dimension_semantics=("parallel",),
            vmem_limit_bytes=_vmem_limit(footprint)),
        cost_estimate=cost,
    )(L, x.reshape(NC, H, W), R)
    return out.reshape(N, C, H_out, W_out)


# ---------------------------------------------------------------------------
# Self-test
# ---------------------------------------------------------------------------
if __name__ == "__main__":
    key = jax.random.PRNGKey(0)

    # 1) Integer scale (module-default usage) -> folded fast path (row grouping
    #    makes the output rows exactly 128 lanes wide).
    x = jax.random.normal(key, (2, 4, 16, 16), dtype=jnp.float32)
    y = jax.block_until_ready(upsample_nearest(x, 2))
    ref = jnp.repeat(jnp.repeat(x, 2, axis=2), 2, axis=3)
    assert y.shape == (2, 4, 32, 32), y.shape
    assert y.dtype == x.dtype, y.dtype
    np.testing.assert_array_equal(np.asarray(y), np.asarray(ref))

    # 2) bf16 input stays on the bf16 MXU path and remains bit-exact.
    xb = x.astype(jnp.bfloat16)
    yb = jax.block_until_ready(upsample_nearest(xb, 2))
    refb = jnp.repeat(jnp.repeat(xb, 2, axis=2), 2, axis=3)
    np.testing.assert_array_equal(np.asarray(yb), np.asarray(refb))

    # 3) Per-axis tuple scale (rows unchanged, columns doubled) -> folded path, s_h=1.
    xt = jax.random.normal(jax.random.PRNGKey(2), (1, 2, 16, 16), dtype=jnp.float32)
    yt = jax.block_until_ready(upsample_nearest(xt, (1, 2)))
    reft = jnp.repeat(xt, 2, axis=3)
    np.testing.assert_array_equal(np.asarray(yt), np.asarray(reft))

    # 4) Fractional scale -> general (non-uniform nearest rows) path.
    x2 = jax.random.normal(jax.random.PRNGKey(1), (2, 3, 8, 8), dtype=jnp.float32)
    y2 = jax.block_until_ready(upsample_nearest(x2, 1.5))
    ri, ho = _nearest_indices(8, 1.5)
    ci, wo = _nearest_indices(8, 1.5)
    ref2 = x2[:, :, ri][:, :, :, ci]
    assert y2.shape == (2, 3, ho, wo), y2.shape
    np.testing.assert_array_equal(np.asarray(y2), np.asarray(ref2))

    # 5) Wide image -> column-tiled fast path (folded R would be too big for VMEM).
    x3 = jax.random.normal(jax.random.PRNGKey(3), (1, 1, 640, 640), dtype=jnp.float32)
    y3 = jax.block_until_ready(upsample_nearest(x3, 2))
    ref3 = jnp.repeat(jnp.repeat(x3, 2, axis=2), 2, axis=3)
    np.testing.assert_array_equal(np.asarray(y3), np.asarray(ref3))

    # 6) Identity scale -> early return, no kernel launch.
    y4 = jax.block_until_ready(upsample_nearest(x, 1))
    np.testing.assert_array_equal(np.asarray(y4), np.asarray(x))

    print("KERNEL_OK")
</pallas_src>

<mosaic_0001>
module attributes {stable_mosaic.version = 11 : i64} {
  func.func @_gather_matmul_kernel(%arg0: i32, %arg1: memref<32x32xf32, #tpu.memory_space<vmem>>, %arg2: memref<32x128xf32, #tpu.memory_space<vmem>>, %arg3: memref<32x128xf32, #tpu.memory_space<vmem>>) attributes {dimension_semantics = [#tpu.dimension_semantics<parallel>], iteration_bounds = array<i64: 2>, scalar_prefetch = 0 : i64, scratch_operands = 0 : i64, tpu.core_type = #tpu.core_type<tc>, window_params = [{transform_indices = @transform_0, window_bounds = array<i64: 32, 32>}, {pipeline_mode = #tpu.pipeline_mode<synchronous>, transform_indices = @transform_1, window_bounds = array<i64: 32, 128>}, {transform_indices = @transform_2, window_bounds = array<i64: 32, 128>}]} {
    %c0 = arith.constant 0 : index
    %c0_0 = arith.constant 0 : index
    %0 = vector.load %arg1[%c0, %c0_0] : memref<32x32xf32, #tpu.memory_space<vmem>>, vector<32x32xf32>
    %c0_1 = arith.constant 0 : index
    %c0_2 = arith.constant 0 : index
    %1 = vector.load %arg2[%c0_1, %c0_2] : memref<32x128xf32, #tpu.memory_space<vmem>>, vector<32x128xf32>
    %cst = arith.constant dense<0.000000e+00> : vector<32x128xf32>
    %2 = tpu.matmul %0, %1, %cst {dimension_numbers = #tpu.dot_dimension_numbers<[1], [0], [0], [1], [0, 0, 1, 1], [], []>} : vector<32x32xf32>, vector<32x128xf32>, vector<32x128xf32> -> vector<32x128xf32>
    %c0_3 = arith.constant 0 : index
    %c0_4 = arith.constant 0 : index
    %3 = vector.load %arg3[%c0_3, %c0_4] : memref<32x128xf32, #tpu.memory_space<vmem>>, vector<32x128xf32>
    tpu.vector_store %arg3[%c0_3, %c0_4], %2 {strides = array<i32>} : memref<32x128xf32, #tpu.memory_space<vmem>>, vector<32x128xf32>,
    return
  }
  func.func @transform_0(%arg0: i32) -> (i32, i32) {
    %c0_i32 = arith.constant 0 : i32
    %c0_i32_0 = arith.constant 0 : i32
    return %arg0, %c0_i32 : i32, i32
  }
  func.func @transform_1(%arg0: i32) -> (i32, i32) {
    %c0_i32 = arith.constant 0 : i32
    %c0_i32_0 = arith.constant 0 : i32
    %c0_i32_1 = arith.constant 0 : i32
    return %c0_i32, %c0_i32_0 : i32, i32
  }
  func.func @transform_2(%arg0: i32) -> (i32, i32) {
    %c0_i32 = arith.constant 0 : i32
    %c0_i32_0 = arith.constant 0 : i32
    return %arg0, %c0_i32 : i32, i32
  }
}

</mosaic_0001>

<llo_original>
// kernel: tpu_custom_call.1
$region0: #{tpu_custom_call.1}
  #allocation0 [shape = 'u32[]', space=smem, size = 0x4, offset = 0x4, fixed_abs, tag = 'smem constant byte address 0x4 - core index']
  #allocation1 [shape = 'u32[144,128]{1,0:T(1,128)}', space=vmem, size = 0x12000, scoped, tag = 'internal scratch']
  %s0 = inlined_call_operand.vmem [shape: f32[64,32], index: 0, kind: input, shape index: {}]
  %s1 = inlined_call_operand.vmem [shape: f32[32,128], index: 1, kind: input, shape index: {}]
  %s2 = inlined_call_operand.hbm [shape: f32[64,128], index: 2, kind: output, shape index: {}]
  %s3 = sld [smem:[#allocation0]]
  $region41: #{tpu_custom_call.1} parent=0
    _
  %s5 = ssub.s32 1, %s3
  %s6 = scalar_select 0, %s5, %s3
  $region1: #{tpu_custom_call.1} parent=0
    #allocation2 [shape = 'u8[32768]{0}', space=vmem, size = 0x8000, scoped, tag = 'output window, operand 0']
    #allocation3 [shape = 's32[2]{0}', space=sflag, size = 0x8, scoped, tag = 'scoped memory for tpu_custom_call.1']
    %7 = vsyncpa [#allocation3], 0
    %s8 = scalar_lea.sflag [#allocation3], 1
    %9 = vsyncpa %s8, 0
    loop: start=0, step=1, limit=4
    $region2: #{tpu_custom_call.1} parent=1 // loop_pre_header
      _
    $region3: #{tpu_custom_call.1} parent=1 // loop_header
      %s11 = sphi 0, %s15
      %p12 = scmp.ge.s32.totalorder %s11, 4
      %s21 = sphi 0, %s23
      %s24 = sphi 0, %s21
      %s25 = sphi 0, %s24
      %s41 = sphi 0, %s25
      %s45 = sphi 0, %s45
      %s47 = sphi 0, %s45
      %s48 = sphi 0, %s47
      %s62 = sphi 0, %s48
      %s68 = sphi 0, %s70
      %s71 = sphi 0, %s68
      %s72 = sphi 0, %s71
      %s88 = sphi 0, %s72
    $region4: #{tpu_custom_call.1} parent=1 // loop_header_branch
      %14 = sbr.rel (%p12) target = $region8
    $region5: #{tpu_custom_call.1} parent=1 // loop_body
      %s16 = ssub.s32 %s11, 1
      %s17 = ssub.s32 %s11, 2
      %s18 = sadd.s32 %s11, 1
      %s19 = ssub.s32 %s11, %s18
      %p20 = scmp.eq.s32.totalorder %s19, 0
      %s22 = sadd.s32 %s21, 1
      %s23 = scalar_select %p20, %s21, %s22
      %p26 = pneg %p20
      %p27 = scmp.eq.s32.totalorder %s11, 1
      %p28 = por %p26, %p27
      %p29 = scmp.ne.s32.totalorder %s21, %s24
      %p30 = scmp.eq.s32.totalorder %s11, 0
      %p31 = por %p29, %p30
      %p32 = scmp.ne.s32.totalorder %s21, %s24
      %p33 = scmp.eq.s32.totalorder %s16, 1
      %p34 = por %p32, %p33
      %p35 = scmp.ne.s32.totalorder %s24, %s25
      %p36 = scmp.eq.s32.totalorder %s16, 0
      %p37 = por %p35, %p36
      %p38 = scmp.ne.s32.totalorder %s24, %s25
      %p39 = scmp.eq.s32.totalorder %s17, 1
      %p40 = por %p38, %p39
      %p42 = scmp.ne.s32.totalorder %s25, %s41
      %p43 = scmp.eq.s32.totalorder %s17, 0
      %p44 = por %p42, %p43
      %s46 = sadd.s32 %s45, 1
      %p49 = scmp.eq.s32.totalorder %s11, 1
      %p50 = scmp.ne.s32.totalorder %s45, %s47
      %p51 = scmp.eq.s32.totalorder %s11, 0
      %p52 = por %p50, %p51
      %p53 = scmp.ne.s32.totalorder %s45, %s47
      %p54 = scmp.eq.s32.totalorder %s16, 1
      %p55 = por %p53, %p54
      %p56 = scmp.ne.s32.totalorder %s47, %s48
      %p57 = scmp.eq.s32.totalorder %s16, 0
      %p58 = por %p56, %p57
      %p59 = scmp.ne.s32.totalorder %s47, %s48
      %p60 = scmp.eq.s32.totalorder %s17, 1
      %p61 = por %p59, %p60
      %p63 = scmp.ne.s32.totalorder %s48, %s62
      %p64 = scmp.eq.s32.totalorder %s17, 0
      %p65 = por %p63, %p64
      %s66 = ssub.s32 %s11, %s18
      %p67 = scmp.eq.s32.totalorder %s66, 0
      %s69 = sadd.s32 %s68, 1
      %s70 = scalar_select %p67, %s68, %s69
      %p73 = pneg %p67
      %p74 = scmp.eq.s32.totalorder %s11, 1
      %p75 = por %p73, %p74
      %p76 = scmp.ne.s32.totalorder %s68, %s71
      %p77 = scmp.eq.s32.totalorder %s11, 0
      %p78 = por %p76, %p77
      %p79 = scmp.ne.s32.totalorder %s68, %s71
      %p80 = scmp.eq.s32.totalorder %s16, 1
      %p81 = por %p79, %p80
      %p82 = scmp.ne.s32.totalorder %s71, %s72
      %p83 = scmp.eq.s32.totalorder %s16, 0
      %p84 = por %p82, %p83
      %p85 = scmp.ne.s32.totalorder %s71, %s72
      %p86 = scmp.eq.s32.totalorder %s17, 1
      %p87 = por %p85, %p86
      %p89 = scmp.ne.s32.totalorder %s72, %s88
      %p90 = scmp.eq.s32.totalorder %s17, 0
      %p91 = por %p89, %p90
      %p92 = scmp.le.s32.totalorder 1, %s11
      %p93 = scmp.lt.s32.totalorder %s11, 3
      %p94 = pnand %p92, %p93
      %p95 = pneg %p94
      // Predicated region
      $region9: #{tpu_custom_call.1} parent=5 // pred_check
        _
      $region10: #{tpu_custom_call.1} parent=5 // pred_check_branch
        %97 = sbr.rel (%p94) target = $region12
      $region11: #{tpu_custom_call.1} parent=5 // pred_region
        %s98 = ssub.s32 %s11, 1
        // Predicated region
        $region13: #{tpu_custom_call.1} parent=11 // pred_check
          %p99 = pneg %p58
        $region14: #{tpu_custom_call.1} parent=11 // pred_check_branch
          %101 = sbr.rel (%p99) target = $region16
        $region15: #{tpu_custom_call.1} parent=11 // pred_region
          _
        $region16: #{tpu_custom_call.1} parent=11 // pred_fallthru
          _
      $region12: #{tpu_custom_call.1} parent=5 // pred_fallthru
        _
      %p102 = scmp.lt.s32.totalorder %s11, 2
      // Predicated region
      $region17: #{tpu_custom_call.1} parent=5 // pred_check
        %p103 = pneg %p102
      $region18: #{tpu_custom_call.1} parent=5 // pred_check_branch
        %105 = sbr.rel (%p103) target = $region20
      $region19: #{tpu_custom_call.1} parent=5 // pred_region
        // Predicated region
        $region21: #{tpu_custom_call.1} parent=19 // pred_check
          %p106 = pneg %p31
        $region22: #{tpu_custom_call.1} parent=19 // pred_check_branch
          %108 = sbr.rel (%p106) target = $region24
        $region23: #{tpu_custom_call.1} parent=19 // pred_region
          %s109 = smul.u32 4, %s11
          %p110 = scmp.lt.s32.totalorder %s109, 7
          %s111 = scalar_select %p110, %s109, 7
          %s112 = smul.addr %s111, 8
          %s113 = scalar_lea.vmem %s0, %s112
          %s114 = smul.u32 4, %s11
        $region24: #{tpu_custom_call.1} parent=19 // pred_fallthru
          _
      $region20: #{tpu_custom_call.1} parent=5 // pred_fallthru
        _
      %p115 = scmp.le.s32.totalorder 1, %s11
      %p116 = scmp.lt.s32.totalorder %s11, 3
      %p117 = pnand %p115, %p116
      %p118 = pneg %p117
      // Predicated region
      $region25: #{tpu_custom_call.1} parent=5 // pred_check
        _
      $region26: #{tpu_custom_call.1} parent=5 // pred_check_branch
        %120 = sbr.rel (%p117) target = $region28
      $region27: #{tpu_custom_call.1} parent=5 // pred_region
        %s121 = ssub.s32 %s11, 1
        %s122 = smul.u32 4, %s16
        %p123 = scmp.lt.s32.totalorder %s122, 7
        %s124 = scalar_select %p123, %s122, 7
        %s125 = smul.addr %s124, 8
        %s126 = scalar_lea.vmem %s0, %s125
        %p127 = pneg %p37
        %p128 = pneg %p34
        %p129 = pneg %p58
        %p130 = pneg %p55
        %p131 = pneg %p84
        %p132 = pneg %p81
        %s133 = sand.u32 %s71, 1
        %s134 = scalar_lea.sflag [#allocation3], %s133
        %s135 = sand.u32 %s71, 1
        %s136 = smul.addr %s135, 32
        %s137 = scalar_lea.vmem [#allocation2], %s136
        %s138 = smul.u32 4, %s16
        %p139 = scmp.lt.s32.totalorder %s138, 7
        %s140 = scalar_select %p139, %s138, 7
        %s141 = smul.addr %s140, 8
        %s142 = scalar_lea.vmem %s0, %s141
        %s143 = smul.u32 4, %s16
        %s144 = smul.u32 4, %s16
        %v145 = vld [vmem:[%s142] sm:$0xff]
        %v146 = vld [vmem:[%s142 + $0x8] sm:$0xff]
        %v147 = vld [vmem:[%s142 + $0x10] sm:$0xff]
        %v148 = vld [vmem:[%s142 + $0x18] sm:$0xff]
        %v149 = vld [vmem:[%s1] sm:$0xff]
        %v150 = vld [vmem:[%s1 + $0x8] sm:$0xff]
        %v151 = vld [vmem:[%s1 + $0x10] sm:$0xff]
        %v152 = vld [vmem:[%s1 + $0x18] sm:$0xff]
        %vm153 = vcmask 261120
        %v155 = vsel %vm153, %v145, 0
        %v158 = vsel %vm153, %v146, 0
        %v161 = vsel %vm153, %v147, 0
        %v164 = vsel %vm153, %v148, 0
        %166 = vmatprep.subr.mxu0 0.0
        %167 = vmatpush1.msra.mxu0 0.0
        %168 = vmatprep.subr.mxu0 0.0
        %169 = vmatpush1.msra.mxu0 0.0
        %170 = vmatprep.subr.mxu0 0.0
        %171 = vmatpush1.msra.mxu0 0.0
        %172 = vmatprep.subr.mxu0 0.0
        %173 = vmatpush1.msra.mxu0 0.0
        %174 = vmatprep.subr.mxu0 0.0
        %175 = vmatpush1.msra.mxu0 0.0
        %176 = vmatprep.subr.mxu0 0.0
        %177 = vmatpush1.msra.mxu0 0.0
        %178 = vmatprep.subr.mxu0 0.0
        %179 = vmatpush1.msra.mxu0 0.0
        %180 = vmatprep.subr.mxu0 0.0
        %181 = vmatpush1.msra.mxu0 0.0
        %182 = vmatprep.subr.mxu0 0.0
        %183 = vmatpush1.msra.mxu0 0.0
        %184 = vmatprep.subr.mxu0 0.0
        %185 = vmatpush1.msra.mxu0 0.0
        %186 = vmatprep.subr.mxu0 0.0
        %187 = vmatpush1.msra.mxu0 0.0
        %188 = vmatprep.subr.mxu0 0.0
        %189 = vmatpush1.msra.mxu0 0.0
        %190 = vmatprep.subr.mxu0 0.0
        %191 = vmatpush1.msra.mxu0 %v152
        %192 = vmatprep.subr.mxu0 0.0
        %193 = vmatpush1.msra.mxu0 %v151
        %194 = vmatprep.subr.mxu0 0.0
        %195 = vmatpush1.msra.mxu0 %v150
        %196 = vmatprep.subr.mxu0 0.0
        %197 = vmatpush1.msra.mxu0 %v149
        %198 = vmatprep.subr.mxu0 0.0
        %199 = vmatpush2.msra.mxu0 0.0
        %200 = vmatprep.subr.mxu0 0.0
        %201 = vmatpush2.msra.mxu0 0.0
        %202 = vmatprep.subr.mxu0 0.0
        %203 = vmatpush2.msra.mxu0 0.0
        %204 = vmatprep.subr.mxu0 0.0
        %205 = vmatpush2.msra.mxu0 0.0
        %206 = vmatprep.subr.mxu0 0.0
        %207 = vmatpush2.msra.mxu0 0.0
        %208 = vmatprep.subr.mxu0 0.0
        %209 = vmatpush2.msra.mxu0 0.0
        %210 = vmatprep.subr.mxu0 0.0
        %211 = vmatpush2.msra.mxu0 0.0
        %212 = vmatprep.subr.mxu0 0.0
        %213 = vmatpush2.msra.mxu0 0.0
        %214 = vmatprep.subr.mxu0 0.0
        %215 = vmatpush2.msra.mxu0 0.0
        %216 = vmatprep.subr.mxu0 0.0
        %217 = vmatpush2.msra.mxu0 0.0
        %218 = vmatprep.subr.mxu0 0.0
        %219 = vmatpush2.msra.mxu0 0.0
        %220 = vmatprep.subr.mxu0 0.0
        %221 = vmatpush2.msra.mxu0 0.0
        %222 = vmatprep.subr.mxu0 0.0
        %223 = vmatpush2.msra.mxu0 0.0
        %224 = vmatprep.subr.mxu0 0.0
        %225 = vmatpush2.msra.mxu0 0.0
        %226 = vmatprep.subr.mxu0 0.0
        %227 = vmatpush2.msra.mxu0 0.0
        %228 = vmatprep.subr.mxu0 0.0
        %229 = vmatpush2.msra.mxu0 0.0
        %230 = vmatprep.mubr.f32.mxu0 0.0
        %231 = vmatmul.mubr.f32.gmra.mxu0 %v155
        %v232 = vpop.f32.mrf.mxu0
        %v233 = vadd.f32 0.0, %v232
        %v234 = vpop.f32.mrf.mxu0
        %235 = vmatprep.mubr.f32.mxu0 0.0
        %236 = vmatmul.mubr.f32.gmra.mxu0 %v158
        %v237 = vpop.f32.mrf.mxu0
        %v238 = vadd.f32 0.0, %v237
        %v239 = vpop.f32.mrf.mxu0
        %240 = vmatprep.mubr.f32.mxu0 0.0
        %241 = vmatmul.mubr.f32.gmra.mxu0 %v161
        %v242 = vpop.f32.mrf.mxu0
        %v243 = vadd.f32 0.0, %v242
        %v244 = vpop.f32.mrf.mxu0
        %245 = vmatprep.mubr.f32.mxu0 0.0
        %246 = vmatmul.mubr.f32.gmra.mxu0 %v164
        %v247 = vpop.f32.mrf.mxu0
        %v248 = vadd.f32 0.0, %v247
        %v249 = vpop.f32.mrf.mxu0
        %250 = vdwg.mxu0
        %251 = vst [vmem:[%s137] sm:$0xff] %v233
        %252 = vst [vmem:[%s137 + $0x8] sm:$0xff] %v238
        %253 = vst [vmem:[%s137 + $0x10] sm:$0xff] %v243
        %254 = vst [vmem:[%s137 + $0x18] sm:$0xff] %v248
        %s255 = sand.u32 %s71, 1
        %s256 = scalar_lea.sflag [#allocation3], %s255
        %s257 = sand.u32 %s71, 1
        %s258 = smul.addr %s257, 32
        %s259 = scalar_lea.vmem [#allocation2], %s258
        // Predicated region
        $region29: #{tpu_custom_call.1} parent=27 // pred_check
          %p260 = pneg %p81
        $region30: #{tpu_custom_call.1} parent=27 // pred_check_branch
          %262 = sbr.rel (%p260) target = $region32
        $region31: #{tpu_custom_call.1} parent=27 // pred_region
          %s263 = smul.u32 4, %s16
          %s265 = ssub.s32 512, 512
          %266 = vsyncadd %s256, %s265
          %s267 = smul.addr %s263, 128
          %s268 = scalar_lea.hbm %s2, %s267
          %s269 = sshll.u32 %s259, 4
          %s270 = int_to_ptr.vmem [resolvable:$true] %s269
          %275 = dma.vmem_to_hbm [thread:$0]  %s270, 512, %s268, %s256, 128, 128, 8
        $region32: #{tpu_custom_call.1} parent=27 // pred_fallthru
          _
      $region28: #{tpu_custom_call.1} parent=5 // pred_fallthru
        _
      %p276 = scmp.le.s32.totalorder 2, %s11
      // Predicated region
      $region33: #{tpu_custom_call.1} parent=5 // pred_check
        %p277 = pneg %p276
      $region34: #{tpu_custom_call.1} parent=5 // pred_check_branch
        %279 = sbr.rel (%p277) target = $region36
      $region35: #{tpu_custom_call.1} parent=5 // pred_region
        %s280 = ssub.s32 %s11, 2
        // Predicated region
        $region37: #{tpu_custom_call.1} parent=35 // pred_check
          %p281 = pneg %p87
        $region38: #{tpu_custom_call.1} parent=35 // pred_check_branch
          %283 = sbr.rel (%p281) target = $region40
        $region39: #{tpu_custom_call.1} parent=35 // pred_region
          %s284 = sand.u32 %s72, 1
          %s285 = scalar_lea.sflag [#allocation3], %s284
          %s286 = sand.u32 %s72, 1
          %s287 = smul.addr %s286, 32
          %s288 = scalar_lea.vmem [#allocation2], %s287
          %289 = dma.done %s285, 512
        $region40: #{tpu_custom_call.1} parent=35 // pred_fallthru
          _
      $region36: #{tpu_custom_call.1} parent=5 // pred_fallthru
        _
    $region6: #{tpu_custom_call.1} parent=1 // loop_footer
      %s15 = sadd.s32 1, %s11
    $region7: #{tpu_custom_call.1} parent=1 // loop_footer_branch
      %10 = sbr.rel target = $region3
    $region8: #{tpu_custom_call.1} parent=1 // loop_exit
      _
    %290 = vsyncpa [#allocation3], 1
    %s291 = scalar_lea.sflag [#allocation3], 1
    %292 = vsyncpa %s291, 1

</llo_original>
